<compile_context>
chip_gen: v7x
topology: tpu7x:2x2x1
jax: 0.10.0
libtpu: 0.0.40
codegen_flags: <defaults>
</compile_context>

<pallas_src>
import jax
import jax.numpy as jnp
from jax.experimental import pallas as pl
from jax.experimental.pallas import tpu as pltpu


def net_kernel(xT_ref, w1_ref, b1_ref, w2_ref, b2_ref, o_ref):
    # xT_ref: (F, TB)   VMEM  -- batch in lanes
    # w1_ref: (H, F)    VMEM  (replicated; == h1.weight)
    # b1_ref: (H, 1)    VMEM  (replicated; column bias)
    # w2_ref: (1, H)    VMEM  (replicated; == out.weight)
    # b2_ref: (1,)      SMEM  scalar
    # o_ref:  (1, TB)   VMEM  lane-dense output row

    # Layer 1: MXU matmul, bias add, EUP tanh — all on a lane-dense (H, TB).
    h = jnp.tanh(
        jnp.dot(w1_ref[...], xT_ref[...], preferred_element_type=jnp.float32)
        + b1_ref[...]
    )

    # Layer 2 (H -> 1): single MXU dot that produces the (1, TB) output row
    # directly in the output layout (no lane reduce / relayout on the XLU).
    out = (
        jnp.dot(w2_ref[...], h, preferred_element_type=jnp.float32)
        + b2_ref[0]
    )
    o_ref[...] = jnp.maximum(out, 0.0).astype(o_ref.dtype)   # ReLU


def _round_up(x, m):
    return (x + m - 1) // m * m


def net_forward(x, w1, b1, w2, b2, *, batch_tile=16384):
    """relu(tanh(x @ W1.T + b1) @ W2.T + b2), returns (B, 1) float32.

    x:  (B, n_feats)
    w1: (n_hid, n_feats)  -- PyTorch h1.weight
    b1: (n_hid,)          -- PyTorch h1.bias
    w2: (1, n_hid)        -- PyTorch out.weight
    b2: (1,)              -- PyTorch out.bias
    """
    B, F = x.shape
    H, Fw = w1.shape
    assert Fw == F
    assert b1.shape == (H,)
    assert w2.shape == (1, H)
    assert b2.shape == (1,)

    # Lane-aligned batch tile: multiple of 128 (lane axis of the (F, tile) x
    # block and of the (1, tile) output block).  Cap at ~cdiv(B, 2) so the
    # parallel batch grid has >= 2 steps whenever B > 128 (v7x megacore).
    tile = max(128, min(_round_up(batch_tile, 128),
                        _round_up(pl.cdiv(B, 2), 128)))
    grid = pl.cdiv(B, tile)

    # One layout pass in XLA: batch-in-lanes.  No whole-array padding; the
    # boundary block (B % tile != 0) is handled by Pallas block masking.
    xT = x.T                      # (F, B)
    b1_col = b1.reshape(H, 1)     # column bias, broadcasts over lanes

    out_row = pl.pallas_call(
        net_kernel,
        out_shape=jax.ShapeDtypeStruct((1, B), jnp.float32),
        grid_spec=pltpu.PrefetchScalarGridSpec(
            num_scalar_prefetch=0,
            grid=(grid,),
            in_specs=[
                pl.BlockSpec((F, tile), lambda i: (0, i)),   # xT batch tile
                pl.BlockSpec((H, F), lambda i: (0, 0)),      # W1 (replicated)
                pl.BlockSpec((H, 1), lambda i: (0, 0)),      # b1 column
                pl.BlockSpec((1, H), lambda i: (0, 0)),      # W2 row
                pl.BlockSpec(memory_space=pltpu.MemorySpace.SMEM),  # b2 scalar
            ],
            out_specs=pl.BlockSpec((1, tile), lambda i: (0, i)),
        ),
        compiler_params=pltpu.CompilerParams(
            dimension_semantics=("parallel",),
            vmem_limit_bytes=48 * 1024 * 1024,
        ),
    )(xT, w1, b1_col, w2, b2)

    # (1, B) lane-dense row -> (B, 1) column, matching the PyTorch output.
    return out_row.reshape(B, 1)


def init_params(key, n_feats, n_hid):
    # Mimics PyTorch nn.Linear default init:
    # uniform(-1/sqrt(fan_in), 1/sqrt(fan_in)) for weight and bias.
    k1, k2, k3, k4 = jax.random.split(key, 4)
    bound1 = 1.0 / jnp.sqrt(jnp.float32(n_feats))
    bound2 = 1.0 / jnp.sqrt(jnp.float32(n_hid))
    w1 = jax.random.uniform(k1, (n_hid, n_feats), jnp.float32, -bound1, bound1)  # h1.weight
    b1 = jax.random.uniform(k2, (n_hid,), jnp.float32, -bound1, bound1)          # h1.bias
    w2 = jax.random.uniform(k3, (1, n_hid), jnp.float32, -bound2, bound2)        # out.weight
    b2 = jax.random.uniform(k4, (1,), jnp.float32, -bound2, bound2)              # out.bias
    return w1, b1, w2, b2


def _reference(x, w1, b1, w2, b2):
    return jnp.maximum(jnp.tanh(x @ w1.T + b1) @ w2.T + b2, 0.0)


if __name__ == "__main__":
    key = jax.random.PRNGKey(0)
    kx, kp, kx2 = jax.random.split(key, 3)

    batch, n_feats, n_hid = 16, 8, 32
    w1, b1, w2, b2 = init_params(kp, n_feats, n_hid)

    # Small-batch case (single tile, grid = 1, boundary-block masking).
    x = jax.random.normal(kx, (batch, n_feats), jnp.float32)
    out = jax.block_until_ready(net_forward(x, w1, b1, w2, b2))
    ref = _reference(x, w1, b1, w2, b2)
    assert out.shape == (batch, 1)
    assert jnp.allclose(out, ref, atol=1e-5, rtol=1e-5), "mismatch vs reference (small)"

    # Ragged, multi-tile case (exercises grid = 2 and a partial last block).
    batch2 = 600
    x2 = jax.random.normal(kx2, (batch2, n_feats), jnp.float32)
    out2 = jax.block_until_ready(net_forward(x2, w1, b1, w2, b2))
    ref2 = _reference(x2, w1, b1, w2, b2)
    assert out2.shape == (batch2, 1)
    assert jnp.allclose(out2, ref2, atol=1e-5, rtol=1e-5), "mismatch vs reference (ragged)"

    print("KERNEL_OK")
</pallas_src>

<mosaic_0001>
module attributes {stable_mosaic.version = 11 : i64} {
  func.func @net_kernel(%arg0: i32, %arg1: memref<8x128xf32, #tpu.memory_space<vmem>>, %arg2: memref<32x8xf32, #tpu.memory_space<vmem>>, %arg3: memref<32x1xf32, #tpu.memory_space<vmem>>, %arg4: memref<1x32xf32, #tpu.memory_space<vmem>>, %arg5: memref<1xf32, #tpu.memory_space<smem>>, %arg6: memref<1x128xf32, #tpu.memory_space<vmem>>) attributes {dimension_semantics = [#tpu.dimension_semantics<parallel>], iteration_bounds = array<i64: 1>, scalar_prefetch = 0 : i64, scratch_operands = 0 : i64, tpu.core_type = #tpu.core_type<tc>, window_params = [{transform_indices = @transform_0, window_bounds = array<i64: 8, 128>}, {pipeline_mode = #tpu.pipeline_mode<synchronous>, transform_indices = @transform_1, window_bounds = array<i64: 32, 8>}, {pipeline_mode = #tpu.pipeline_mode<synchronous>, transform_indices = @transform_2, window_bounds = array<i64: 32, 1>}, {pipeline_mode = #tpu.pipeline_mode<synchronous>, transform_indices = @transform_3, window_bounds = array<i64: 1, 32>}, {transform_indices = @transform_4, window_bounds = array<i64: 1>}, {transform_indices = @transform_5, window_bounds = array<i64: 1, 128>}]} {
    %c0 = arith.constant 0 : index
    %c0_0 = arith.constant 0 : index
    %0 = vector.load %arg2[%c0, %c0_0] : memref<32x8xf32, #tpu.memory_space<vmem>>, vector<32x8xf32>
    %c0_1 = arith.constant 0 : index
    %c0_2 = arith.constant 0 : index
    %1 = vector.load %arg1[%c0_1, %c0_2] : memref<8x128xf32, #tpu.memory_space<vmem>>, vector<8x128xf32>
    %cst = arith.constant dense<0.000000e+00> : vector<32x128xf32>
    %2 = tpu.matmul %0, %1, %cst {dimension_numbers = #tpu.dot_dimension_numbers<[1], [0], [0], [1], [0, 0, 1, 1], [], []>} : vector<32x8xf32>, vector<8x128xf32>, vector<32x128xf32> -> vector<32x128xf32>
    %c0_3 = arith.constant 0 : index
    %c0_4 = arith.constant 0 : index
    %3 = vector.load %arg3[%c0_3, %c0_4] : memref<32x1xf32, #tpu.memory_space<vmem>>, vector<32x1xf32>
    %4 = vector.broadcast %3 : vector<32x1xf32> to vector<32x128xf32>
    %5 = arith.addf %2, %4 : vector<32x128xf32>
    %6 = math.tanh %5 : vector<32x128xf32>
    %c0_5 = arith.constant 0 : index
    %c0_6 = arith.constant 0 : index
    %7 = vector.load %arg4[%c0_5, %c0_6] : memref<1x32xf32, #tpu.memory_space<vmem>>, vector<1x32xf32>
    %cst_7 = arith.constant dense<0.000000e+00> : vector<1x128xf32>
    %8 = tpu.matmul %7, %6, %cst_7 {dimension_numbers = #tpu.dot_dimension_numbers<[1], [0], [0], [1], [0, 0, 1, 1], [], []>} : vector<1x32xf32>, vector<32x128xf32>, vector<1x128xf32> -> vector<1x128xf32>
    %c0_8 = arith.constant 0 : index
    %9 = memref.load %arg5[%c0_8] : memref<1xf32, #tpu.memory_space<smem>>
    %10 = vector.broadcast %9 : f32 to vector<1x128xf32>
    %11 = arith.addf %8, %10 : vector<1x128xf32>
    %cst_9 = arith.constant 0.000000e+00 : f32
    %12 = vector.broadcast %cst_9 : f32 to vector<1x128xf32>
    %13 = arith.maximumf %11, %12 : vector<1x128xf32>
    %c0_10 = arith.constant 0 : index
    %c0_11 = arith.constant 0 : index
    %14 = vector.load %arg6[%c0_10, %c0_11] : memref<1x128xf32, #tpu.memory_space<vmem>>, vector<1x128xf32>
    tpu.vector_store %arg6[%c0_10, %c0_11], %13 {strides = array<i32>} : memref<1x128xf32, #tpu.memory_space<vmem>>, vector<1x128xf32>,
    return
  }
  func.func @transform_0(%arg0: i32) -> (i32, i32) {
    %c0_i32 = arith.constant 0 : i32
    %c0_i32_0 = arith.constant 0 : i32
    return %c0_i32, %arg0 : i32, i32
  }
  func.func @transform_1(%arg0: i32) -> (i32, i32) {
    %c0_i32 = arith.constant 0 : i32
    %c0_i32_0 = arith.constant 0 : i32
    %c0_i32_1 = arith.constant 0 : i32
    return %c0_i32, %c0_i32_0 : i32, i32
  }
  func.func @transform_2(%arg0: i32) -> (i32, i32) {
    %c0_i32 = arith.constant 0 : i32
    %c0_i32_0 = arith.constant 0 : i32
    %c0_i32_1 = arith.constant 0 : i32
    return %c0_i32, %c0_i32_0 : i32, i32
  }
  func.func @transform_3(%arg0: i32) -> (i32, i32) {
    %c0_i32 = arith.constant 0 : i32
    %c0_i32_0 = arith.constant 0 : i32
    %c0_i32_1 = arith.constant 0 : i32
    return %c0_i32, %c0_i32_0 : i32, i32
  }
  func.func @transform_4(%arg0: i32) -> i32 {
    %c0_i32 = arith.constant 0 : i32
    %c0_i32_0 = arith.constant 0 : i32
    return %c0_i32 : i32
  }
  func.func @transform_5(%arg0: i32) -> (i32, i32) {
    %c0_i32 = arith.constant 0 : i32
    %c0_i32_0 = arith.constant 0 : i32
    return %c0_i32, %arg0 : i32, i32
  }
}

</mosaic_0001>

<llo_original>
// kernel: tpu_custom_call.1
$region0: #{tpu_custom_call.1}
  #allocation0 [shape = 'u32[]', space=smem, size = 0x4, offset = 0x4, fixed_abs, tag = 'smem constant byte address 0x4 - core index']
  #allocation1 [shape = 'u32[144,128]{1,0:T(1,128)}', space=vmem, size = 0x12000, scoped, tag = 'internal scratch']
  #allocation2 [shape = 'f32[1]{0:T(128)S(6)}', space=smem, size = 0x200, scoped, tag = 'scoped memory for tpu_custom_call.1']
  %s0 = inlined_call_operand.vmem [shape: f32[8,16], index: 0, kind: input, shape index: {}]
  %s1 = inlined_call_operand.vmem [shape: f32[32,8], index: 1, kind: input, shape index: {}]
  %s2 = inlined_call_operand.vmem [shape: f32[32,1], index: 2, kind: input, shape index: {}]
  %s3 = inlined_call_operand.vmem [shape: f32[1,32], index: 3, kind: input, shape index: {}]
  %s4 = inlined_call_operand.<no memory space> [shape: f32[1], index: 4, kind: input, shape index: {}]
  %s5 = inlined_call_operand.hbm [shape: f32[1,16], index: 5, kind: output, shape index: {}]
  %s6 = sld [smem:[#allocation0]]
  $region30: #{tpu_custom_call.1} parent=0
    _
  %s8 = ssub.s32 1, %s6
  %s9 = scalar_select 0, %s8, %s6
  %10 = sst [smem:[#allocation2]] %s4
  $region1: #{tpu_custom_call.1} parent=0
    #allocation3 [shape = 'u8[512]{0}', space=vmem, size = 0x400, scoped, tag = 'output window, operand 0, single buffered']
    #allocation4 [shape = 's32[1]{0}', space=sflag, size = 0x4, scoped, tag = 'scoped memory for tpu_custom_call.1']
    %11 = vsyncpa [#allocation4], 0
    // Predicated region
    $region2: #{tpu_custom_call.1} parent=1 // pred_check
      _
    $region3: #{tpu_custom_call.1} parent=1 // pred_check_branch
      %13 = sbr.rel (0) target = $region5
    $region4: #{tpu_custom_call.1} parent=1 // pred_region
      _
    $region5: #{tpu_custom_call.1} parent=1 // pred_fallthru
      _
    // Predicated region
    $region6: #{tpu_custom_call.1} parent=1 // pred_check
      _
    $region7: #{tpu_custom_call.1} parent=1 // pred_check_branch
      %15 = sbr.rel (0) target = $region9
    $region8: #{tpu_custom_call.1} parent=1 // pred_region
      _
    $region9: #{tpu_custom_call.1} parent=1 // pred_fallthru
      _
    // Predicated region
    $region10: #{tpu_custom_call.1} parent=1 // pred_check
      _
    $region11: #{tpu_custom_call.1} parent=1 // pred_check_branch
      %17 = sbr.rel (0) target = $region13
    $region12: #{tpu_custom_call.1} parent=1 // pred_region
      _
    $region13: #{tpu_custom_call.1} parent=1 // pred_fallthru
      _
    // Predicated region
    $region14: #{tpu_custom_call.1} parent=1 // pred_check
      _
    $region15: #{tpu_custom_call.1} parent=1 // pred_check_branch
      %19 = sbr.rel (0) target = $region17
    $region16: #{tpu_custom_call.1} parent=1 // pred_region
      _
    $region17: #{tpu_custom_call.1} parent=1 // pred_fallthru
      _
    // Predicated region
    $region18: #{tpu_custom_call.1} parent=1 // pred_check
      _
    $region19: #{tpu_custom_call.1} parent=1 // pred_check_branch
      %21 = sbr.rel (0) target = $region21
    $region20: #{tpu_custom_call.1} parent=1 // pred_region
      _
    $region21: #{tpu_custom_call.1} parent=1 // pred_fallthru
      _
    %v22 = vld [vmem:[%s1] sm:$0xff]
    %v23 = vld [vmem:[%s1 + $0x8] sm:$0xff]
    %v24 = vld [vmem:[%s1 + $0x10] sm:$0xff]
    %v25 = vld [vmem:[%s1 + $0x18] sm:$0xff]
    %v26 = vld [vmem:[%s0] sm:$0xff]
    %v27 = vld [vmem:[%s2] sm:$0xff]
    %v28 = vld [vmem:[%s2 + $0x8] sm:$0xff]
    %v29 = vld [vmem:[%s2 + $0x10] sm:$0xff]
    %v30 = vld [vmem:[%s2 + $0x18] sm:$0xff]
    %32 = vset.pattern.permute.xlu0 0
    %33 = vperm.xlu0 %32, %v27
    %v34 = vpop.permute.xlu0 %33
    %37 = vset.pattern.permute.xlu0 0
    %38 = vperm.xlu0 %37, %v28
    %v39 = vpop.permute.xlu0 %38
    %42 = vset.pattern.permute.xlu0 0
    %43 = vperm.xlu0 %42, %v29
    %v44 = vpop.permute.xlu0 %43
    %47 = vset.pattern.permute.xlu0 0
    %48 = vperm.xlu0 %47, %v30
    %v49 = vpop.permute.xlu0 %48
    %vm51 = vcmask 64512
    %v53 = vsel %vm51, %v22, 0
    %v56 = vsel %vm51, %v23, 0
    %v59 = vsel %vm51, %v24, 0
    %v62 = vsel %vm51, %v25, 0
    %64 = vmatprep.subr.mxu0 0.0
    %65 = vmatpush1.msra.mxu0 %v26
    %66 = vmatprep.subr.mxu0 0.0
    %67 = vmatpush1.msra.mxu0 0.0
    %68 = vmatprep.subr.mxu0 0.0
    %69 = vmatpush1.msra.mxu0 0.0
    %70 = vmatprep.subr.mxu0 0.0
    %71 = vmatpush1.msra.mxu0 0.0
    %72 = vmatprep.subr.mxu0 0.0
    %73 = vmatpush1.msra.mxu0 0.0
    %74 = vmatprep.subr.mxu0 0.0
    %75 = vmatpush1.msra.mxu0 0.0
    %76 = vmatprep.subr.mxu0 0.0
    %77 = vmatpush1.msra.mxu0 0.0
    %78 = vmatprep.subr.mxu0 0.0
    %79 = vmatpush1.msra.mxu0 0.0
    %80 = vmatprep.subr.mxu0 0.0
    %81 = vmatpush1.msra.mxu0 0.0
    %82 = vmatprep.subr.mxu0 0.0
    %83 = vmatpush1.msra.mxu0 0.0
    %84 = vmatprep.subr.mxu0 0.0
    %85 = vmatpush1.msra.mxu0 0.0
    %86 = vmatprep.subr.mxu0 0.0
    %87 = vmatpush1.msra.mxu0 0.0
    %88 = vmatprep.subr.mxu0 0.0
    %89 = vmatpush1.msra.mxu0 0.0
    %90 = vmatprep.subr.mxu0 0.0
    %91 = vmatpush1.msra.mxu0 0.0
    %92 = vmatprep.subr.mxu0 0.0
    %93 = vmatpush1.msra.mxu0 0.0
    %94 = vmatprep.subr.mxu0 0.0
    %95 = vmatpush1.msra.mxu0 0.0
    %96 = vmatprep.subr.mxu0 0.0
    %97 = vmatpush1.msra.mxu0 0.0
    %98 = vmatprep.subr.mxu0 0.0
    %99 = vmatpush1.msra.mxu0 0.0
    %100 = vmatprep.subr.mxu0 0.0
    %101 = vmatpush1.msra.mxu0 0.0
    %102 = vmatprep.subr.mxu0 0.0
    %103 = vmatpush1.msra.mxu0 0.0
    %104 = vmatprep.subr.mxu0 0.0
    %105 = vmatpush1.msra.mxu0 0.0
    %106 = vmatprep.subr.mxu0 0.0
    %107 = vmatpush1.msra.mxu0 0.0
    %108 = vmatprep.subr.mxu0 0.0
    %109 = vmatpush1.msra.mxu0 0.0
    %110 = vmatprep.subr.mxu0 0.0
    %111 = vmatpush1.msra.mxu0 0.0
    %112 = vmatprep.subr.mxu0 0.0
    %113 = vmatpush1.msra.mxu0 0.0
    %114 = vmatprep.subr.mxu0 0.0
    %115 = vmatpush1.msra.mxu0 0.0
    %116 = vmatprep.subr.mxu0 0.0
    %117 = vmatpush1.msra.mxu0 0.0
    %118 = vmatprep.subr.mxu0 0.0
    %119 = vmatpush1.msra.mxu0 0.0
    %120 = vmatprep.subr.mxu0 0.0
    %121 = vmatpush1.msra.mxu0 0.0
    %122 = vmatprep.subr.mxu0 0.0
    %123 = vmatpush1.msra.mxu0 0.0
    %124 = vmatprep.subr.mxu0 0.0
    %125 = vmatpush1.msra.mxu0 0.0
    %126 = vmatprep.subr.mxu0 0.0
    %127 = vmatpush1.msra.mxu0 0.0
    %128 = vmatprep.mubr.f32.mxu0 0.0
    %129 = vmatmul.mubr.f32.gmra.mrb[0].mxu0 %v53
    %v130 = vpop.f32.mrb[0].mxu0
    %v131 = vadd.f32 %v34, %v130
    %v132 = vpop.f32.mrb[0].mxu0
    %133 = vmatprep.mubr.f32.mxu0 0.0
    %134 = vmatmul.mubr.f32.gmra.mrb[0].mxu0 %v56
    %v135 = vpop.f32.mrb[0].mxu0
    %v136 = vadd.f32 %v39, %v135
    %v137 = vpop.f32.mrb[0].mxu0
    %138 = vmatprep.mubr.f32.mxu0 0.0
    %139 = vmatmul.mubr.f32.gmra.mrb[0].mxu0 %v59
    %v140 = vpop.f32.mrb[0].mxu0
    %v141 = vadd.f32 %v44, %v140
    %v142 = vpop.f32.mrb[0].mxu0
    %143 = vmatprep.mubr.f32.mxu0 0.0
    %144 = vmatmul.mubr.f32.gmra.mrb[0].mxu0 %v62
    %v145 = vpop.f32.mrb[0].mxu0
    %v146 = vadd.f32 %v49, %v145
    %v147 = vpop.f32.mrb[0].mxu0
    %148 = vdwg.mxu0
    %v149 = vtanh.pop %v131
    %v150 = vtanh.pop %v136
    %v151 = vtanh.pop %v141
    %v152 = vtanh.pop %v146
    %v153 = vld [vmem:[%s3] sm:$0x1]
    %s154 = sld [smem:[#allocation2]]
    %v155 = vstv %s154
    %vm156 = vcmask 261120
    %v158 = vsel %vm156, %v153, 0
    %160 = vmatprep.subr.mxu0 0.0
    %161 = vmatpush1.msra.mxu0 %v149
    %162 = vmatprep.subr.mxu0 0.0
    %163 = vmatpush1.msra.mxu0 %v150
    %164 = vmatprep.subr.mxu0 0.0
    %165 = vmatpush1.msra.mxu0 %v151
    %166 = vmatprep.subr.mxu0 0.0
    %167 = vmatpush1.msra.mxu0 %v152
    %168 = vmatprep.subr.mxu0 0.0
    %169 = vmatpush1.msra.mxu0 0.0
    %170 = vmatprep.subr.mxu0 0.0
    %171 = vmatpush1.msra.mxu0 0.0
    %172 = vmatprep.subr.mxu0 0.0
    %173 = vmatpush1.msra.mxu0 0.0
    %174 = vmatprep.subr.mxu0 0.0
    %175 = vmatpush1.msra.mxu0 0.0
    %176 = vmatprep.subr.mxu0 0.0
    %177 = vmatpush1.msra.mxu0 0.0
    %178 = vmatprep.subr.mxu0 0.0
    %179 = vmatpush1.msra.mxu0 0.0
    %180 = vmatprep.subr.mxu0 0.0
    %181 = vmatpush1.msra.mxu0 0.0
    %182 = vmatprep.subr.mxu0 0.0
    %183 = vmatpush1.msra.mxu0 0.0
    %184 = vmatprep.subr.mxu0 0.0
    %185 = vmatpush1.msra.mxu0 0.0
    %186 = vmatprep.subr.mxu0 0.0
    %187 = vmatpush1.msra.mxu0 0.0
    %188 = vmatprep.subr.mxu0 0.0
    %189 = vmatpush1.msra.mxu0 0.0
    %190 = vmatprep.subr.mxu0 0.0
    %191 = vmatpush1.msra.mxu0 0.0
    %192 = vmatprep.subr.mxu0 0.0
    %193 = vmatpush1.msra.mxu0 0.0
    %194 = vmatprep.subr.mxu0 0.0
    %195 = vmatpush1.msra.mxu0 0.0
    %196 = vmatprep.subr.mxu0 0.0
    %197 = vmatpush1.msra.mxu0 0.0
    %198 = vmatprep.subr.mxu0 0.0
    %199 = vmatpush1.msra.mxu0 0.0
    %200 = vmatprep.subr.mxu0 0.0
    %201 = vmatpush1.msra.mxu0 0.0
    %202 = vmatprep.subr.mxu0 0.0
    %203 = vmatpush1.msra.mxu0 0.0
    %204 = vmatprep.subr.mxu0 0.0
    %205 = vmatpush1.msra.mxu0 0.0
    %206 = vmatprep.subr.mxu0 0.0
    %207 = vmatpush1.msra.mxu0 0.0
    %208 = vmatprep.subr.mxu0 0.0
    %209 = vmatpush1.msra.mxu0 0.0
    %210 = vmatprep.subr.mxu0 0.0
    %211 = vmatpush1.msra.mxu0 0.0
    %212 = vmatprep.subr.mxu0 0.0
    %213 = vmatpush1.msra.mxu0 0.0
    %214 = vmatprep.subr.mxu0 0.0
    %215 = vmatpush1.msra.mxu0 0.0
    %216 = vmatprep.subr.mxu0 0.0
    %217 = vmatpush1.msra.mxu0 0.0
    %218 = vmatprep.subr.mxu0 0.0
    %219 = vmatpush1.msra.mxu0 0.0
    %220 = vmatprep.subr.mxu0 0.0
    %221 = vmatpush1.msra.mxu0 0.0
    %222 = vmatprep.subr.mxu0 0.0
    %223 = vmatpush1.msra.mxu0 0.0
    %224 = vmatprep.mubr.f32.mxu0 0.0
    %225 = vmatmul.mubr.f32.gmra.mrb[0].mxu0 %v158
    %v226 = vpop.f32.mrb[0].mxu0
    %v227 = vadd.f32 %v155, %v226
    %v228 = vpop.f32.mrb[0].mxu0
    %229 = vdwg.mxu0
    %v230 = vmax.f32 %v227, 0.0
    %231 = vst [vmem:[#allocation3] sm:$0x1] %v230
    // Predicated region
    $region22: #{tpu_custom_call.1} parent=1 // pred_check
      _
    $region23: #{tpu_custom_call.1} parent=1 // pred_check_branch
      %233 = sbr.rel (0) target = $region25
    $region24: #{tpu_custom_call.1} parent=1 // pred_region
      %s235 = ssub.s32 16, 16
      %236 = vsyncadd [#allocation4], %s235
      %s238 = sshll.u32 [#allocation3], 4
      %s239 = int_to_ptr.vmem [resolvable:$true] %s238
      %241 = dma.vmem_to_hbm [thread:$0]  %s239, 16, %s5, [#allocation4]
    $region25: #{tpu_custom_call.1} parent=1 // pred_fallthru
      _
    // Predicated region
    $region26: #{tpu_custom_call.1} parent=1 // pred_check
      _
    $region27: #{tpu_custom_call.1} parent=1 // pred_check_branch
      %243 = sbr.rel (0) target = $region29
    $region28: #{tpu_custom_call.1} parent=1 // pred_region
      %244 = dma.done [#allocation4], 16
    $region29: #{tpu_custom_call.1} parent=1 // pred_fallthru
      _
    %245 = vsyncpa [#allocation4], 1

</llo_original>
